<compile_context>
chip_gen: v7x
topology: tpu7x:2x2x1
jax: 0.10.0
libtpu: 0.0.40
codegen_flags: <defaults>
</compile_context>

<pallas_src>
import functools

import jax
import jax.numpy as jnp
from jax.experimental import pallas as pl
from jax.experimental.pallas import tpu as pltpu

_SQRT_HALF = 0.7071067811865476  # 1/sqrt(2)


def _round_up(x, m):
    return ((x + m - 1) // m) * m


def _sublane_multiple(dtype):
    # sub-32-bit dtypes pack along sublanes: 8 rows for f32, 16 for bf16, 32 for int8/fp8
    return max(8, 32 // jnp.dtype(dtype).itemsize)


@functools.lru_cache(maxsize=None)
def _vmem_limit_bytes():
    """~3/4 of physical VMEM (headroom for compiler-internal scratch):
    ~48 MiB on v7x (64 MiB / TC), ~96 MiB on v5e/v6e (128 MiB)."""
    cap = None
    try:
        cap = int(pltpu.get_tpu_info().vmem_capacity_bytes)
    except Exception:
        cap = None
    if not cap or cap <= 0:
        cap = 64 * 1024 * 1024  # conservative fallback if the query is unavailable
    return (cap * 3) // 4


def _probe_copy_kernel(x_ref, o_ref):
    o_ref[...] = x_ref[...] + 1.0


@functools.lru_cache(maxsize=None)
def _single_buffer_weights_ok():
    """True iff this jax supports pipeline_mode=pl.Buffered(1) on a constant-index BlockSpec
    (single-buffered weights).  Probed once with a tiny kernel so we never crash on older jax."""
    try:
        spec = pl.BlockSpec((8, 128), lambda i: (0, 0), pipeline_mode=pl.Buffered(1))
        fn = pl.pallas_call(
            _probe_copy_kernel,
            out_shape=jax.ShapeDtypeStruct((8, 128), jnp.float32),
            grid=(2,),
            in_specs=[spec],
            out_specs=pl.BlockSpec((8, 128), lambda i: (0, 0)),
        )
        x = jnp.arange(8 * 128, dtype=jnp.float32).reshape(8, 128)
        out = jax.block_until_ready(fn(x))
        return bool(jnp.allclose(out, x + 1.0))
    except Exception:
        return False


def _const_spec(block_shape):
    """BlockSpec for a grid-invariant operand (weights / biases): constant index map and, when
    supported, a single VMEM buffer (constant-index blocks gain nothing from double-buffering)."""
    index_map = lambda *_: (0,) * len(block_shape)
    if _single_buffer_weights_ok():
        return pl.BlockSpec(block_shape, index_map, pipeline_mode=pl.Buffered(1))
    return pl.BlockSpec(block_shape, index_map)


def _layer_norm_f32(x, gamma, beta, eps):
    mean = jnp.mean(x, axis=-1, keepdims=True)
    xc = x - mean
    var = jnp.mean(xc * xc, axis=-1, keepdims=True)
    return xc * jax.lax.rsqrt(var + eps) * gamma + beta


# ---------------------------------------------------------------------------
# Kernels
# ---------------------------------------------------------------------------

def _ln_matmul_kernel(x_ref, g_ref, b_ref, w_ref, o_ref, *, eps):
    """out = LayerNorm(x) @ W   (no bias; used for the QKV projection)."""
    xn = _layer_norm_f32(x_ref[...].astype(jnp.float32),
                         g_ref[...].astype(jnp.float32),
                         b_ref[...].astype(jnp.float32), eps)
    o_ref[...] = jnp.dot(xn.astype(w_ref.dtype), w_ref[...],
                         preferred_element_type=jnp.float32).astype(o_ref.dtype)


def _attn_core_kernel(qkv_ref, o_ref, *, scale, heads):
    """softmax(q k^T * scale) v for every head of one batch element.

    qkv_ref: (N, 3, heads, dim_head) block read straight out of the QKV projection buffer.
    o_ref:   (N, heads, dim_head) block written in the 'b n (h d)' layout the output projection
             consumes, so no wrapper-side transposes / pads are needed any more.
    All heads are processed per grid step (one contiguous DMA per batch element); the per-head
    loop is unrolled statically with plain 2-D MXU dots, which avoids 3-D relayouts while keeping
    the grid-step count at B.  dim_head = heads is lane-sparse by construction (model config) —
    accepted as the architectural ceiling here.
    """
    # TODO(synk): flash-style KV tiling + online softmax once N is non-trivial (the (N, N)
    # scores per head do not scale past a few K tokens).
    for h in range(heads):
        q = qkv_ref[:, 0, h, :]
        k = qkv_ref[:, 1, h, :]
        v = qkv_ref[:, 2, h, :]
        s = jax.lax.dot_general(q, k, (((1,), (1,)), ((), ())),
                                preferred_element_type=jnp.float32) * scale
        s_max = jnp.max(s, axis=-1, keepdims=True)
        p = jnp.exp(s - s_max)
        l = jnp.sum(p, axis=-1, keepdims=True)                     # (N, 1)
        o = jnp.dot(p.astype(v.dtype), v, preferred_element_type=jnp.float32)
        # deferred softmax normalization: one EUP reciprocal over (N, 1) + a VPU multiply
        o_ref[:, h, :] = (o * pl.reciprocal(l, approx=True)).astype(o_ref.dtype)


def _proj_residual_kernel(a_ref, res_ref, w_ref, b_ref, o_ref):
    """out = a @ W_out + b_out + residual."""
    y = jnp.dot(a_ref[...], w_ref[...], preferred_element_type=jnp.float32)
    o_ref[...] = (y + b_ref[...].astype(jnp.float32)
                  + res_ref[...].astype(jnp.float32)).astype(o_ref.dtype)


def _ffn_resident_kernel(x_ref, g_ref, b_ref, w1_ref, b1_ref, w2_ref, b2_ref, o_ref, *, eps):
    """out = GELU(LN(x) @ W1 + b1) @ W2 + b2 + x with W1/W2 fully VMEM-resident."""
    x = x_ref[...].astype(jnp.float32)
    xn = _layer_norm_f32(x, g_ref[...].astype(jnp.float32),
                         b_ref[...].astype(jnp.float32), eps)
    h = jnp.dot(xn.astype(w1_ref.dtype), w1_ref[...], preferred_element_type=jnp.float32)
    h = h + b1_ref[...].astype(jnp.float32)
    h = 0.5 * h * (1.0 + jax.lax.erf(h * _SQRT_HALF))              # exact GELU (torch default)
    y = jnp.dot(h.astype(w2_ref.dtype), w2_ref[...], preferred_element_type=jnp.float32)
    o_ref[...] = (y + b2_ref[...].astype(jnp.float32) + x).astype(o_ref.dtype)


def _ffn_tiled_kernel(x_ref, g_ref, b_ref, w1_ref, b1_ref, w2_ref, b2_ref, o_ref,
                      xn_ref, acc_ref, *, eps):
    """Hidden-dim tiled FFN: f32 VMEM accumulator, LN(x) cached across hidden tiles."""
    k = pl.program_id(1)

    @pl.when(k == 0)
    def _():
        x = x_ref[...].astype(jnp.float32)
        xn = _layer_norm_f32(x, g_ref[...].astype(jnp.float32),
                             b_ref[...].astype(jnp.float32), eps)
        xn_ref[...] = xn.astype(xn_ref.dtype)
        acc_ref[...] = jnp.zeros_like(acc_ref)

    h = jnp.dot(xn_ref[...], w1_ref[...], preferred_element_type=jnp.float32)
    h = h + b1_ref[...].astype(jnp.float32)
    h = 0.5 * h * (1.0 + jax.lax.erf(h * _SQRT_HALF))
    acc_ref[...] += jnp.dot(h.astype(w2_ref.dtype), w2_ref[...],
                            preferred_element_type=jnp.float32)

    @pl.when(k == pl.num_programs(1) - 1)
    def _():
        y = acc_ref[...] + b2_ref[...].astype(jnp.float32) + x_ref[...].astype(jnp.float32)
        o_ref[...] = y.astype(o_ref.dtype)


def _ln_kernel(x_ref, g_ref, b_ref, o_ref, *, eps):
    o_ref[...] = _layer_norm_f32(x_ref[...].astype(jnp.float32),
                                 g_ref[...].astype(jnp.float32),
                                 b_ref[...].astype(jnp.float32), eps).astype(o_ref.dtype)


# ---------------------------------------------------------------------------
# pallas_call wrappers
# ---------------------------------------------------------------------------

def _rows_params():
    return pltpu.CompilerParams(dimension_semantics=("parallel",),
                                vmem_limit_bytes=_vmem_limit_bytes())


def _ln_matmul(x, gamma, beta, w, *, tile_m, eps):
    rows, dim = x.shape
    out_dim = w.shape[1]
    # TODO(synk): K-tile the contraction (f32 accumulator on an 'arbitrary' axis) for v7x
    # production dims when dim * out_dim * itemsize approaches ~1/3 of the 64 MiB/TC VMEM.
    return pl.pallas_call(
        functools.partial(_ln_matmul_kernel, eps=eps),
        out_shape=jax.ShapeDtypeStruct((rows, out_dim), x.dtype),
        grid=(pl.cdiv(rows, tile_m),),
        in_specs=[
            pl.BlockSpec((tile_m, dim), lambda i: (i, 0)),
            _const_spec((1, dim)),
            _const_spec((1, dim)),
            _const_spec((dim, out_dim)),
        ],
        out_specs=pl.BlockSpec((tile_m, out_dim), lambda i: (i, 0)),
        compiler_params=_rows_params(),
    )(x, gamma.reshape(1, dim), beta.reshape(1, dim), w)


def _attention_core(qkv, *, batch, seq, heads, dim_head, scale):
    """qkv: (B*N, 3*heads*dim_head) QKV projection output.
    Returns (B*N, heads*dim_head) attention output in 'b n (h d)' (projection-ready) layout.
    The 5-D reshape below is a free row-major view; all head bookkeeping happens in-kernel."""
    qkv5 = qkv.reshape(batch, seq, 3, heads, dim_head)
    out = pl.pallas_call(
        functools.partial(_attn_core_kernel, scale=scale, heads=heads),
        out_shape=jax.ShapeDtypeStruct((batch, seq, heads, dim_head), qkv.dtype),
        grid=(batch,),
        in_specs=[pl.BlockSpec((None, seq, 3, heads, dim_head),
                               lambda b: (b, 0, 0, 0, 0))],
        out_specs=pl.BlockSpec((None, seq, heads, dim_head), lambda b: (b, 0, 0, 0)),
        compiler_params=pltpu.CompilerParams(
            dimension_semantics=("parallel",),
            vmem_limit_bytes=_vmem_limit_bytes()),
    )(qkv5)
    return out.reshape(batch * seq, heads * dim_head)


def _proj_residual(a, res, w, b, *, tile_m):
    rows, inner = a.shape
    dim = w.shape[1]
    return pl.pallas_call(
        _proj_residual_kernel,
        out_shape=jax.ShapeDtypeStruct((rows, dim), res.dtype),
        grid=(pl.cdiv(rows, tile_m),),
        in_specs=[
            pl.BlockSpec((tile_m, inner), lambda i: (i, 0)),
            pl.BlockSpec((tile_m, dim), lambda i: (i, 0)),
            _const_spec((inner, dim)),
            _const_spec((1, dim)),
        ],
        out_specs=pl.BlockSpec((tile_m, dim), lambda i: (i, 0)),
        compiler_params=_rows_params(),
    )(a, res, w, b.reshape(1, dim))


def _pick_hidden_tile(hidden, want):
    """Largest 128-multiple <= want that divides hidden (no per-call weight padding needed)."""
    want = min(want, hidden)
    t = want - want % 128
    while t >= 128:
        if hidden % t == 0:
            return t
        t -= 128
    return hidden


def _feed_forward(x, gamma, beta, w1, b1, w2, b2, *, tile_m, tile_h, eps, resident=None):
    rows, dim = x.shape
    hidden = w1.shape[1]
    itemsize = jnp.dtype(w1.dtype).itemsize
    n_row_tiles = pl.cdiv(rows, tile_m)
    vmem_budget = _vmem_limit_bytes()

    if resident is None:
        # weights (worst case double-buffered) + per-step activations vs. half the VMEM budget
        weight_bytes = 2 * 2 * dim * hidden * itemsize
        act_bytes = 2 * 2 * tile_m * dim * itemsize + 4 * tile_m * hidden + 4 * tile_m * dim
        resident = (weight_bytes + act_bytes) < (vmem_budget // 2)

    cost = pl.CostEstimate(
        flops=int(4 * rows * dim * hidden),                        # two matmuls, 2 flops/MAC
        transcendentals=int(rows * hidden),                        # erf
        bytes_accessed=int(2 * rows * dim * x.dtype.itemsize       # x in + out
                           + (1 if resident else n_row_tiles)      # weight streaming passes
                           * itemsize * (2 * dim * hidden + hidden + dim)),
    )

    if resident:
        # W1/W2 stay VMEM-resident for the whole call: no per-row-tile re-streaming of weights.
        return pl.pallas_call(
            functools.partial(_ffn_resident_kernel, eps=eps),
            out_shape=jax.ShapeDtypeStruct((rows, dim), x.dtype),
            grid=(n_row_tiles,),
            in_specs=[
                pl.BlockSpec((tile_m, dim), lambda i: (i, 0)),
                _const_spec((1, dim)),
                _const_spec((1, dim)),
                _const_spec((dim, hidden)),
                _const_spec((1, hidden)),
                _const_spec((hidden, dim)),
                _const_spec((1, dim)),
            ],
            out_specs=pl.BlockSpec((tile_m, dim), lambda i: (i, 0)),
            compiler_params=_rows_params(),
            cost_estimate=cost,
        )(x, gamma.reshape(1, dim), beta.reshape(1, dim),
          w1, b1.reshape(1, hidden), w2, b2.reshape(1, dim))

    tile_h = _pick_hidden_tile(hidden, tile_h)
    return pl.pallas_call(
        functools.partial(_ffn_tiled_kernel, eps=eps),
        out_shape=jax.ShapeDtypeStruct((rows, dim), x.dtype),
        grid=(n_row_tiles, hidden // tile_h),
        in_specs=[
            pl.BlockSpec((tile_m, dim), lambda i, k: (i, 0)),      # x / residual tile
            _const_spec((1, dim)),                                 # LN weight
            _const_spec((1, dim)),                                 # LN bias
            pl.BlockSpec((dim, tile_h), lambda i, k: (0, k)),      # W1 hidden tile
            pl.BlockSpec((1, tile_h), lambda i, k: (0, k)),        # b1 hidden tile
            pl.BlockSpec((tile_h, dim), lambda i, k: (k, 0)),      # W2 hidden tile
            _const_spec((1, dim)),                                 # b2
        ],
        out_specs=pl.BlockSpec((tile_m, dim), lambda i, k: (i, 0)),
        scratch_shapes=[
            pltpu.VMEM((tile_m, dim), w1.dtype),       # cached LN(x) in MXU input dtype
            pltpu.VMEM((tile_m, dim), jnp.float32),    # f32 accumulator
        ],
        compiler_params=pltpu.CompilerParams(
            dimension_semantics=("parallel", "arbitrary"),
            vmem_limit_bytes=_vmem_limit_bytes()),
        cost_estimate=cost,
    )(x, gamma.reshape(1, dim), beta.reshape(1, dim),
      w1, b1.reshape(1, hidden), w2, b2.reshape(1, dim))


def _layernorm(x, gamma, beta, *, tile_m, eps):
    rows, dim = x.shape
    return pl.pallas_call(
        functools.partial(_ln_kernel, eps=eps),
        out_shape=jax.ShapeDtypeStruct((rows, dim), x.dtype),
        grid=(pl.cdiv(rows, tile_m),),
        in_specs=[
            pl.BlockSpec((tile_m, dim), lambda i: (i, 0)),
            _const_spec((1, dim)),
            _const_spec((1, dim)),
        ],
        out_specs=pl.BlockSpec((tile_m, dim), lambda i: (i, 0)),
        compiler_params=_rows_params(),
    )(x, gamma.reshape(1, dim), beta.reshape(1, dim))


# ---------------------------------------------------------------------------
# TransEncoder forward
# ---------------------------------------------------------------------------

def trans_encoder(x, params, *, tile_m=256, tile_h=512, eps=1e-5, ffn_resident=None):
    """x: (B, N, dim) -> (B, N, dim). Equivalent to TransEncoder.forward (eval, dropout=0)."""
    B, N, dim = x.shape
    heads = params["heads"]
    dim_head = heads                        # TransEncoder passes dim_head = heads
    inner = heads * dim_head
    project_out = not (heads == 1 and dim_head == dim)
    scale = float(dim_head) ** -0.5

    rows = B * N
    sub = _sublane_multiple(x.dtype)
    tile_m = max(sub, min(tile_m, _round_up(rows, sub)))
    if rows >= 2 * sub:
        # keep >= 2 row tiles so a 'parallel' grid axis can split across v7x's two TensorCores
        tile_m = min(tile_m, _round_up(pl.cdiv(rows, 2), sub))

    # NOTE: for production shapes, dim / inner should be multiples of 128 for lane-dense stores;
    # the tiny demo dims below rely on the "block == full array dim" exemption.
    xr = x.reshape(rows, dim)
    for layer in params["layers"]:
        # ---- Attention block: x = attn(x) + x ----
        qkv = _ln_matmul(xr, layer["attn_ln_w"], layer["attn_ln_b"], layer["w_qkv"],
                         tile_m=tile_m, eps=eps)                    # (rows, 3*inner)
        attn = _attention_core(qkv, batch=B, seq=N, heads=heads, dim_head=dim_head,
                               scale=scale)                         # (rows, inner), 'b n (h d)'
        if project_out:
            xr = _proj_residual(attn, xr, layer["w_out"], layer["b_out"], tile_m=tile_m)
        else:
            xr = attn + xr                  # to_out == nn.Identity()

        # ---- FeedForward block: x = ff(x) + x ----
        xr = _feed_forward(xr, layer["ff_ln_w"], layer["ff_ln_b"],
                           layer["ff_w1"], layer["ff_b1"],
                           layer["ff_w2"], layer["ff_b2"],
                           tile_m=tile_m, tile_h=tile_h, eps=eps, resident=ffn_resident)

    out = _layernorm(xr, params["final_ln_w"], params["final_ln_b"], tile_m=tile_m, eps=eps)
    return out.reshape(B, N, dim)


# ---------------------------------------------------------------------------
# Params, pure-JAX reference, demo
# ---------------------------------------------------------------------------

def init_params(key, dim, depth, heads, mlp_dim, dtype=jnp.float32):
    dim_head = heads
    inner = heads * dim_head

    def uniform(k, shape, fan_in):
        bound = 1.0 / (fan_in ** 0.5)
        return jax.random.uniform(k, shape, dtype, -bound, bound)

    layers = []
    for _ in range(depth):
        key, kqkv, kow, kob, k1w, k1b, k2w, k2b = jax.random.split(key, 8)
        layers.append({
            "attn_ln_w": jnp.ones((dim,), dtype),
            "attn_ln_b": jnp.zeros((dim,), dtype),
            "w_qkv": uniform(kqkv, (dim, 3 * inner), dim),
            "w_out": uniform(kow, (inner, dim), inner),
            "b_out": uniform(kob, (dim,), inner),
            "ff_ln_w": jnp.ones((dim,), dtype),
            "ff_ln_b": jnp.zeros((dim,), dtype),
            "ff_w1": uniform(k1w, (dim, mlp_dim), dim),
            "ff_b1": uniform(k1b, (mlp_dim,), dim),
            "ff_w2": uniform(k2w, (mlp_dim, dim), mlp_dim),
            "ff_b2": uniform(k2b, (dim,), mlp_dim),
        })
    return {
        "heads": heads,
        "layers": layers,
        "final_ln_w": jnp.ones((dim,), dtype),
        "final_ln_b": jnp.zeros((dim,), dtype),
    }


def _reference(x, params, eps=1e-5):
    def ln(t, g, b):
        m = jnp.mean(t, axis=-1, keepdims=True)
        v = jnp.mean((t - m) ** 2, axis=-1, keepdims=True)
        return (t - m) / jnp.sqrt(v + eps) * g + b

    B, N, dim = x.shape
    heads = params["heads"]
    dim_head = heads
    inner = heads * dim_head
    project_out = not (heads == 1 and dim_head == dim)
    scale = float(dim_head) ** -0.5

    for layer in params["layers"]:
        xn = ln(x, layer["attn_ln_w"], layer["attn_ln_b"])
        qkv = xn @ layer["w_qkv"]
        q, k, v = jnp.split(qkv, 3, axis=-1)
        q, k, v = (t.reshape(B, N, heads, dim_head).transpose(0, 2, 1, 3) for t in (q, k, v))
        dots = jnp.einsum("bhnd,bhmd->bhnm", q, k) * scale
        attn = jax.nn.softmax(dots, axis=-1)
        out = jnp.einsum("bhnm,bhmd->bhnd", attn, v)
        out = out.transpose(0, 2, 1, 3).reshape(B, N, inner)
        if project_out:
            out = out @ layer["w_out"] + layer["b_out"]
        x = out + x
        xn = ln(x, layer["ff_ln_w"], layer["ff_ln_b"])
        h = jax.nn.gelu(xn @ layer["ff_w1"] + layer["ff_b1"], approximate=False)
        x = h @ layer["ff_w2"] + layer["ff_b2"] + x
    return ln(x, params["final_ln_w"], params["final_ln_b"])


if __name__ == "__main__":
    key = jax.random.PRNGKey(0)
    kx, kp, kx2, kp2 = jax.random.split(key, 4)

    # Tolerance is slightly looser than pure-f32 because the attention kernel uses the
    # approximate EUP reciprocal for the deferred softmax normalization.
    ATOL = RTOL = 2e-2

    # Case 1: default config (auto -> FFN weights fully VMEM-resident).
    B, N, dim, heads, mlp_dim, depth = 2, 8, 32, 8, 64, 2
    x = jax.random.normal(kx, (B, N, dim), jnp.float32)
    params = init_params(kp, dim, depth, heads, mlp_dim)
    out = jax.block_until_ready(trans_encoder(x, params))
    ref = _reference(x, params)
    assert out.shape == (B, N, dim)
    err = float(jnp.max(jnp.abs(out - ref)))
    assert jnp.allclose(out, ref, atol=ATOL, rtol=RTOL), f"case1 mismatch (max abs err {err})"

    # Case 2: force the hidden-tiled FFN path (tile_h=128 divides mlp_dim -> no weight padding).
    B2, N2, dim2, heads2, mlp2, depth2 = 2, 8, 32, 8, 256, 1
    x2 = jax.random.normal(kx2, (B2, N2, dim2), jnp.float32)
    params2 = init_params(kp2, dim2, depth2, heads2, mlp2)
    out2 = jax.block_until_ready(trans_encoder(x2, params2, tile_h=128, ffn_resident=False))
    ref2 = _reference(x2, params2)
    err2 = float(jnp.max(jnp.abs(out2 - ref2)))
    assert jnp.allclose(out2, ref2, atol=ATOL, rtol=RTOL), f"case2 mismatch (max abs err {err2})"

    print("KERNEL_OK")
</pallas_src>

<mosaic_0001>
module attributes {stable_mosaic.version = 11 : i64} {
  func.func @_probe_copy_kernel(%arg0: i32, %arg1: memref<8x128xf32, #tpu.memory_space<vmem>>, %arg2: memref<8x128xf32, #tpu.memory_space<vmem>>) attributes {dimension_semantics = [#tpu.dimension_semantics<arbitrary>], iteration_bounds = array<i64: 2>, scalar_prefetch = 0 : i64, scratch_operands = 0 : i64, tpu.core_type = #tpu.core_type<tc>, window_params = [{pipeline_mode = #tpu.pipeline_mode<synchronous>, transform_indices = @transform_0, window_bounds = array<i64: 8, 128>}, {pipeline_mode = #tpu.pipeline_mode<synchronous>, transform_indices = @transform_1, window_bounds = array<i64: 8, 128>}]} {
    %c0 = arith.constant 0 : index
    %c0_0 = arith.constant 0 : index
    %0 = vector.load %arg1[%c0, %c0_0] : memref<8x128xf32, #tpu.memory_space<vmem>>, vector<8x128xf32>
    %cst = arith.constant 1.000000e+00 : f32
    %1 = vector.broadcast %cst : f32 to vector<8x128xf32>
    %2 = arith.addf %0, %1 : vector<8x128xf32>
    %c0_1 = arith.constant 0 : index
    %c0_2 = arith.constant 0 : index
    %3 = vector.load %arg2[%c0_1, %c0_2] : memref<8x128xf32, #tpu.memory_space<vmem>>, vector<8x128xf32>
    tpu.vector_store %arg2[%c0_1, %c0_2], %2 {strides = array<i32>} : memref<8x128xf32, #tpu.memory_space<vmem>>, vector<8x128xf32>,
    return
  }
  func.func @transform_0(%arg0: i32) -> (i32, i32) {
    %c0_i32 = arith.constant 0 : i32
    %c0_i32_0 = arith.constant 0 : i32
    %c0_i32_1 = arith.constant 0 : i32
    return %c0_i32, %c0_i32_0 : i32, i32
  }
  func.func @transform_1(%arg0: i32) -> (i32, i32) {
    %c0_i32 = arith.constant 0 : i32
    %c0_i32_0 = arith.constant 0 : i32
    %c0_i32_1 = arith.constant 0 : i32
    return %c0_i32, %c0_i32_0 : i32, i32
  }
}

module attributes {stable_mosaic.version = 11 : i64} {
  func.func @_ln_matmul_kernel(%arg0: i32, %arg1: memref<8x32xf32, #tpu.memory_space<vmem>>, %arg2: memref<1x32xf32, #tpu.memory_space<vmem>>, %arg3: memref<1x32xf32, #tpu.memory_space<vmem>>, %arg4: memref<32x192xf32, #tpu.memory_space<vmem>>, %arg5: memref<8x192xf32, #tpu.memory_space<vmem>>) attributes {dimension_semantics = [#tpu.dimension_semantics<parallel>], iteration_bounds = array<i64: 2>, scalar_prefetch = 0 : i64, scratch_operands = 0 : i64, tpu.core_type = #tpu.core_type<tc>, window_params = [{transform_indices = @transform_0, window_bounds = array<i64: 8, 32>}, {pipeline_mode = #tpu.pipeline_mode<synchronous>, transform_indices = @transform_1, window_bounds = array<i64: 1, 32>}, {pipeline_mode = #tpu.pipeline_mode<synchronous>, transform_indices = @transform_2, window_bounds = array<i64: 1, 32>}, {pipeline_mode = #tpu.pipeline_mode<synchronous>, transform_indices = @transform_3, window_bounds = array<i64: 32, 192>}, {transform_indices = @transform_4, window_bounds = array<i64: 8, 192>}]} {
    %c0 = arith.constant 0 : index
    %c0_0 = arith.constant 0 : index
    %0 = vector.load %arg1[%c0, %c0_0] : memref<8x32xf32, #tpu.memory_space<vmem>>, vector<8x32xf32>
    %c0_1 = arith.constant 0 : index
    %c0_2 = arith.constant 0 : index
    %1 = vector.load %arg2[%c0_1, %c0_2] : memref<1x32xf32, #tpu.memory_space<vmem>>, vector<1x32xf32>
    %c0_3 = arith.constant 0 : index
    %c0_4 = arith.constant 0 : index
    %2 = vector.load %arg3[%c0_3, %c0_4] : memref<1x32xf32, #tpu.memory_space<vmem>>, vector<1x32xf32>
    %cst = arith.constant dense<0.000000e+00> : vector<8xf32>
    %3 = vector.multi_reduction <add>, %0, %cst [1] : vector<8x32xf32> to vector<8xf32>
    %4 = vector.shape_cast %3 : vector<8xf32> to vector<8x1xf32>
    %cst_5 = arith.constant 3.200000e+01 : f32
    %5 = vector.broadcast %cst_5 : f32 to vector<8x1xf32>
    %6 = arith.divf %4, %5 : vector<8x1xf32>
    %7 = vector.broadcast %6 : vector<8x1xf32> to vector<8x32xf32>
    %8 = arith.subf %0, %7 : vector<8x32xf32>
    %9 = arith.mulf %8, %8 : vector<8x32xf32>
    %cst_6 = arith.constant dense<0.000000e+00> : vector<8xf32>
    %10 = vector.multi_reduction <add>, %9, %cst_6 [1] : vector<8x32xf32> to vector<8xf32>
    %11 = vector.shape_cast %10 : vector<8xf32> to vector<8x1xf32>
    %cst_7 = arith.constant 3.200000e+01 : f32
    %12 = vector.broadcast %cst_7 : f32 to vector<8x1xf32>
    %13 = arith.divf %11, %12 : vector<8x1xf32>
    %cst_8 = arith.constant 9.99999974E-6 : f32
    %14 = vector.broadcast %cst_8 : f32 to vector<8x1xf32>
    %15 = arith.addf %13, %14 : vector<8x1xf32>
    %16 = math.rsqrt %15 : vector<8x1xf32>
    %17 = vector.broadcast %16 : vector<8x1xf32> to vector<8x32xf32>
    %18 = arith.mulf %8, %17 : vector<8x32xf32>
    %19 = vector.broadcast %1 : vector<1x32xf32> to vector<8x32xf32>
    %20 = arith.mulf %18, %19 : vector<8x32xf32>
    %21 = vector.broadcast %2 : vector<1x32xf32> to vector<8x32xf32>
    %22 = arith.addf %20, %21 : vector<8x32xf32>
    %c0_9 = arith.constant 0 : index
    %c0_10 = arith.constant 0 : index
    %23 = vector.load %arg4[%c0_9, %c0_10] : memref<32x192xf32, #tpu.memory_space<vmem>>, vector<32x192xf32>
    %cst_11 = arith.constant dense<0.000000e+00> : vector<8x192xf32>
    %24 = tpu.matmul %22, %23, %cst_11 {dimension_numbers = #tpu.dot_dimension_numbers<[1], [0], [0], [1], [0, 0, 1, 1], [], []>} : vector<8x32xf32>, vector<32x192xf32>, vector<8x192xf32> -> vector<8x192xf32>
    %c0_12 = arith.constant 0 : index
    %c0_13 = arith.constant 0 : index
    %25 = vector.load %arg5[%c0_12, %c0_13] : memref<8x192xf32, #tpu.memory_space<vmem>>, vector<8x192xf32>
    tpu.vector_store %arg5[%c0_12, %c0_13], %24 {strides = array<i32>} : memref<8x192xf32, #tpu.memory_space<vmem>>, vector<8x192xf32>,
    return
  }
  func.func @transform_0(%arg0: i32) -> (i32, i32) {
    %c0_i32 = arith.constant 0 : i32
    %c0_i32_0 = arith.constant 0 : i32
    return %arg0, %c0_i32 : i32, i32
  }
  func.func @transform_1(%arg0: i32) -> (i32, i32) {
    %c0_i32 = arith.constant 0 : i32
    %c0_i32_0 = arith.constant 0 : i32
    %c0_i32_1 = arith.constant 0 : i32
    return %c0_i32, %c0_i32_0 : i32, i32
  }
  func.func @transform_2(%arg0: i32) -> (i32, i32) {
    %c0_i32 = arith.constant 0 : i32
    %c0_i32_0 = arith.constant 0 : i32
    %c0_i32_1 = arith.constant 0 : i32
    return %c0_i32, %c0_i32_0 : i32, i32
  }
  func.func @transform_3(%arg0: i32) -> (i32, i32) {
    %c0_i32 = arith.constant 0 : i32
    %c0_i32_0 = arith.constant 0 : i32
    %c0_i32_1 = arith.constant 0 : i32
    return %c0_i32, %c0_i32_0 : i32, i32
  }
  func.func @transform_4(%arg0: i32) -> (i32, i32) {
    %c0_i32 = arith.constant 0 : i32
    %c0_i32_0 = arith.constant 0 : i32
    return %arg0, %c0_i32 : i32, i32
  }
}

</mosaic_0001>

<llo_original>
// kernel: tpu_custom_call.1
$region0: #{tpu_custom_call.1}
  #allocation0 [shape = 'u32[]', space=smem, size = 0x4, offset = 0x4, fixed_abs, tag = 'smem constant byte address 0x4 - core index']
  #allocation1 [shape = 'u32[144,128]{1,0:T(1,128)}', space=vmem, size = 0x12000, scoped, tag = 'internal scratch']
  %s0 = inlined_call_operand.hbm [shape: f32[8,128], index: 0, kind: input, shape index: {}]
  %s1 = inlined_call_operand.hbm [shape: f32[8,128], index: 1, kind: output, shape index: {}]
  %s2 = sld [smem:[#allocation0]]
  $region41: #{tpu_custom_call.1} parent=0
    _
  %s4 = ssub.s32 1, %s2
  %s5 = scalar_select 0, %s4, %s2
  $region1: #{tpu_custom_call.1} parent=0
    #allocation2 [shape = 'u8[4096]{0}', space=vmem, size = 0x1000, scoped, tag = 'input window, operand 0, single buffered']
    #allocation3 [shape = 's32[2]{0}', space=sflag, size = 0x8, scoped, tag = 'scoped memory for tpu_custom_call.1']
    #allocation4 [shape = 's32[2]{0}', space=sflag, size = 0x8, scoped, tag = 'scoped memory for tpu_custom_call.1']
    #allocation5 [shape = 'u8[4096]{0}', space=vmem, size = 0x1000, scoped, tag = 'output window, operand 0, single buffered']
    %6 = vsyncpa [#allocation3], 0
    %7 = vsyncpa [#allocation4], 0
    loop: start=0, step=1, limit=4
    $region2: #{tpu_custom_call.1} parent=1 // loop_pre_header
      _
    $region3: #{tpu_custom_call.1} parent=1 // loop_header
      %s9 = sphi 0, %s13
      %p10 = scmp.ge.s32.totalorder %s9, 4
      %s17 = sphi 0, %s17
      %s19 = sphi 0, %s17
      %s20 = sphi 0, %s19
      %s34 = sphi 0, %s20
      %s38 = sphi 0, %s38
      %s40 = sphi 0, %s38
      %s41 = sphi 0, %s40
      %s55 = sphi 0, %s41
    $region4: #{tpu_custom_call.1} parent=1 // loop_header_branch
      %12 = sbr.rel (%p10) target = $region8
    $region5: #{tpu_custom_call.1} parent=1 // loop_body
      %s14 = ssub.s32 %s9, 1
      %s15 = ssub.s32 %s9, 2
      %s16 = sadd.s32 %s9, 1
      %s18 = sadd.s32 %s17, 1
      %p21 = scmp.eq.s32.totalorder %s9, 1
      %p22 = scmp.ne.s32.totalorder %s17, %s19
      %p23 = scmp.eq.s32.totalorder %s9, 0
      %p24 = por %p22, %p23
      %p25 = scmp.ne.s32.totalorder %s17, %s19
      %p26 = scmp.eq.s32.totalorder %s14, 1
      %p27 = por %p25, %p26
      %p28 = scmp.ne.s32.totalorder %s19, %s20
      %p29 = scmp.eq.s32.totalorder %s14, 0
      %p30 = por %p28, %p29
      %p31 = scmp.ne.s32.totalorder %s19, %s20
      %p32 = scmp.eq.s32.totalorder %s15, 1
      %p33 = por %p31, %p32
      %p35 = scmp.ne.s32.totalorder %s20, %s34
      %p36 = scmp.eq.s32.totalorder %s15, 0
      %p37 = por %p35, %p36
      %s39 = sadd.s32 %s38, 1
      %p42 = scmp.eq.s32.totalorder %s9, 1
      %p43 = scmp.ne.s32.totalorder %s38, %s40
      %p44 = scmp.eq.s32.totalorder %s9, 0
      %p45 = por %p43, %p44
      %p46 = scmp.ne.s32.totalorder %s38, %s40
      %p47 = scmp.eq.s32.totalorder %s14, 1
      %p48 = por %p46, %p47
      %p49 = scmp.ne.s32.totalorder %s40, %s41
      %p50 = scmp.eq.s32.totalorder %s14, 0
      %p51 = por %p49, %p50
      %p52 = scmp.ne.s32.totalorder %s40, %s41
      %p53 = scmp.eq.s32.totalorder %s15, 1
      %p54 = por %p52, %p53
      %p56 = scmp.ne.s32.totalorder %s41, %s55
      %p57 = scmp.eq.s32.totalorder %s15, 0
      %p58 = por %p56, %p57
      %p59 = scmp.le.s32.totalorder 1, %s9
      %p60 = scmp.lt.s32.totalorder %s9, 3
      %p61 = pnand %p59, %p60
      %p62 = pneg %p61
      // Predicated region
      $region9: #{tpu_custom_call.1} parent=5 // pred_check
        _
      $region10: #{tpu_custom_call.1} parent=5 // pred_check_branch
        %64 = sbr.rel (%p61) target = $region12
      $region11: #{tpu_custom_call.1} parent=5 // pred_region
        %s65 = ssub.s32 %s9, 1
        // Predicated region
        $region13: #{tpu_custom_call.1} parent=11 // pred_check
          %p66 = pneg %p30
        $region14: #{tpu_custom_call.1} parent=11 // pred_check_branch
          %68 = sbr.rel (%p66) target = $region16
        $region15: #{tpu_custom_call.1} parent=11 // pred_region
          %s70 = ssub.s32 128, 128
          %71 = vsyncadd [#allocation3], %s70
          %s73 = sshll.u32 [#allocation2], 4
          %s74 = int_to_ptr.vmem [resolvable:$true] %s73
          %76 = dma.hbm_to_vmem [thread:$0]  %s0, 128, %s74, [#allocation3]
        $region16: #{tpu_custom_call.1} parent=11 // pred_fallthru
          _
      $region12: #{tpu_custom_call.1} parent=5 // pred_fallthru
        _
      %p77 = scmp.lt.s32.totalorder %s9, 2
      // Predicated region
      $region17: #{tpu_custom_call.1} parent=5 // pred_check
        %p78 = pneg %p77
      $region18: #{tpu_custom_call.1} parent=5 // pred_check_branch
        %80 = sbr.rel (%p78) target = $region20
      $region19: #{tpu_custom_call.1} parent=5 // pred_region
        _
      $region20: #{tpu_custom_call.1} parent=5 // pred_fallthru
        _
      %p81 = scmp.le.s32.totalorder 1, %s9
      %p82 = scmp.lt.s32.totalorder %s9, 3
      %p83 = pnand %p81, %p82
      %p84 = pneg %p83
      // Predicated region
      $region21: #{tpu_custom_call.1} parent=5 // pred_check
        _
      $region22: #{tpu_custom_call.1} parent=5 // pred_check_branch
        %86 = sbr.rel (%p83) target = $region24
      $region23: #{tpu_custom_call.1} parent=5 // pred_region
        %s87 = ssub.s32 %s9, 1
        // Predicated region
        $region25: #{tpu_custom_call.1} parent=23 // pred_check
          %p88 = pneg %p30
        $region26: #{tpu_custom_call.1} parent=23 // pred_check_branch
          %90 = sbr.rel (%p88) target = $region28
        $region27: #{tpu_custom_call.1} parent=23 // pred_region
          %91 = dma.done [#allocation3], 128
        $region28: #{tpu_custom_call.1} parent=23 // pred_fallthru
          _
        %p92 = pneg %p30
        %p93 = pneg %p27
        %p94 = pneg %p51
        %p95 = pneg %p48
        %v96 = vld [vmem:[#allocation2] sm:$0xff]
        %v97 = vadd.f32 %v96, 1.0
        %98 = vst [vmem:[#allocation5] sm:$0xff] %v97
        // Predicated region
        $region29: #{tpu_custom_call.1} parent=23 // pred_check
          %p99 = pneg %p48
        $region30: #{tpu_custom_call.1} parent=23 // pred_check_branch
          %101 = sbr.rel (%p99) target = $region32
        $region31: #{tpu_custom_call.1} parent=23 // pred_region
          %s103 = ssub.s32 128, 128
          %104 = vsyncadd [#allocation4], %s103
          %s106 = sshll.u32 [#allocation5], 4
          %s107 = int_to_ptr.vmem [resolvable:$true] %s106
          %109 = dma.vmem_to_hbm [thread:$0]  %s107, 128, %s1, [#allocation4]
        $region32: #{tpu_custom_call.1} parent=23 // pred_fallthru
          _
        // Predicated region
        $region33: #{tpu_custom_call.1} parent=23 // pred_check
          %p110 = pneg %p48
        $region34: #{tpu_custom_call.1} parent=23 // pred_check_branch
          %112 = sbr.rel (%p110) target = $region36
        $region35: #{tpu_custom_call.1} parent=23 // pred_region
          %113 = dma.done [#allocation4], 128
        $region36: #{tpu_custom_call.1} parent=23 // pred_fallthru
          _
      $region24: #{tpu_custom_call.1} parent=5 // pred_fallthru
        _
      %p114 = scmp.le.s32.totalorder 2, %s9
      // Predicated region
      $region37: #{tpu_custom_call.1} parent=5 // pred_check
        %p115 = pneg %p114
      $region38: #{tpu_custom_call.1} parent=5 // pred_check_branch
        %117 = sbr.rel (%p115) target = $region40
      $region39: #{tpu_custom_call.1} parent=5 // pred_region
        %s118 = ssub.s32 %s9, 2
      $region40: #{tpu_custom_call.1} parent=5 // pred_fallthru
        _
    $region6: #{tpu_custom_call.1} parent=1 // loop_footer
      %s13 = sadd.s32 1, %s9
    $region7: #{tpu_custom_call.1} parent=1 // loop_footer_branch
      %8 = sbr.rel target = $region3
    $region8: #{tpu_custom_call.1} parent=1 // loop_exit
      _
    %119 = vsyncpa [#allocation3], 1
    %s120 = scalar_lea.sflag [#allocation3], 1
    %121 = vsyncpa %s120, 1
    %122 = vsyncpa [#allocation4], 1
    %s123 = scalar_lea.sflag [#allocation4], 1
    %124 = vsyncpa %s123, 1

// kernel: tpu_custom_call.1
$region0: #{tpu_custom_call.1}
  #allocation0 [shape = 'u32[]', space=smem, size = 0x4, offset = 0x4, fixed_abs, tag = 'smem constant byte address 0x4 - core index']
  #allocation1 [shape = 'u32[144,128]{1,0:T(1,128)}', space=vmem, size = 0x12000, scoped, tag = 'internal scratch']
  %s0 = inlined_call_operand.hbm [shape: f32[16,32], index: 0, kind: input, shape index: {}]
  %s1 = inlined_call_operand.vmem [shape: f32[1,32], index: 1, kind: input, shape index: {}]
  %s2 = inlined_call_operand.vmem [shape: f32[1,32], index: 2, kind: input, shape index: {}]
  %s3 = inlined_call_operand.hbm [shape: f32[32,192], index: 3, kind: input, shape index: {}]
  %s4 = inlined_call_operand.hbm [shape: f32[16,192], index: 4, kind: output, shape index: {}]
  %s5 = sld [smem:[#allocation0]]
  $region57: #{tpu_custom_call.1} parent=0
    _
  %s7 = ssub.s32 1, %s5
  %s8 = scalar_select 0, %s7, %s5
  $region1: #{tpu_custom_call.1} parent=0
    #allocation2 [shape = 'u8[8192]{0}', space=vmem, size = 0x2000, scoped, tag = 'input window, operand 0']
    #allocation3 [shape = 's32[2]{0}', space=sflag, size = 0x8, scoped, tag = 'scoped memory for tpu_custom_call.1']
    #allocation4 [shape = 's32[2]{0}', space=sflag, size = 0x8, scoped, tag = 'scoped memory for tpu_custom_call.1']
    #allocation5 [shape = 'u8[32768]{0}', space=vmem, size = 0x8000, scoped, tag = 'input window, operand 3, single buffered']
    #allocation6 [shape = 's32[1]{0}', space=sflag, size = 0x4, scoped, tag = 'scoped memory for tpu_custom_call.1']
    #allocation7 [shape = 'u8[16384]{0}', space=vmem, size = 0x4000, scoped, tag = 'output window, operand 0']
    %9 = vsyncpa [#allocation3], 0
    %s10 = scalar_lea.sflag [#allocation3], 1
    %11 = vsyncpa %s10, 0
    %12 = vsyncpa [#allocation6], 0
    %13 = vsyncpa [#allocation4], 0
    %s14 = scalar_lea.sflag [#allocation4], 1
    %15 = vsyncpa %s14, 0
    loop: start=0, step=1, limit=4
    $region2: #{tpu_custom_call.1} parent=1 // loop_pre_header
      _
    $region3: #{tpu_custom_call.1} parent=1 // loop_header
      %s17 = sphi 0, %s21
      %p18 = scmp.ge.s32.totalorder %s17, 4
      %s27 = sphi 0, %s29
      %s30 = sphi 0, %s27
      %s31 = sphi 0, %s30
      %s47 = sphi 0, %s31
      %s51 = sphi 0, %s51
      %s53 = sphi 0, %s51
      %s54 = sphi 0, %s53
      %s68 = sphi 0, %s54
      %s72 = sphi 0, %s72
      %s74 = sphi 0, %s72
      %s75 = sphi 0, %s74
      %s89 = sphi 0, %s75
      %s93 = sphi 0, %s93
      %s95 = sphi 0, %s93
      %s96 = sphi 0, %s95
      %s110 = sphi 0, %s96
      %s116 = sphi 0, %s118
      %s119 = sphi 0, %s116
      %s120 = sphi 0, %s119
      %s136 = sphi 0, %s120
    $region4: #{tpu_custom_call.1} parent=1 // loop_header_branch
      %20 = sbr.rel (%p18) target = $region8
    $region5: #{tpu_custom_call.1} parent=1 // loop_body
      %s22 = ssub.s32 %s17, 1
      %s23 = ssub.s32 %s17, 2
      %s24 = sadd.s32 %s17, 1
      %s25 = ssub.s32 %s17, %s24
      %p26 = scmp.eq.s32.totalorder %s25, 0
      %s28 = sadd.s32 %s27, 1
      %s29 = scalar_select %p26, %s27, %s28
      %p32 = pneg %p26
      %p33 = scmp.eq.s32.totalorder %s17, 1
      %p34 = por %p32, %p33
      %p35 = scmp.ne.s32.totalorder %s27, %s30
      %p36 = scmp.eq.s32.totalorder %s17, 0
      %p37 = por %p35, %p36
      %p38 = scmp.ne.s32.totalorder %s27, %s30
      %p39 = scmp.eq.s32.totalorder %s22, 1
      %p40 = por %p38, %p39
      %p41 = scmp.ne.s32.totalorder %s30, %s31
      %p42 = scmp.eq.s32.totalorder %s22, 0
      %p43 = por %p41, %p42
      %p44 = scmp.ne.s32.totalorder %s30, %s31
      %p45 = scmp.eq.s32.totalorder %s23, 1
      %p46 = por %p44, %p45
      %p48 = scmp.ne.s32.totalorder %s31, %s47
      %p49 = scmp.eq.s32.totalorder %s23, 0
      %p50 = por %p48, %p49
      %s52 = sadd.s32 %s51, 1
      %p55 = scmp.eq.s32.totalorder %s17, 1
      %p56 = scmp.ne.s32.totalorder %s51, %s53
      %p57 = scmp.eq.s32.totalorder %s17, 0
      %p58 = por %p56, %p57
      %p59 = scmp.ne.s32.totalorder %s51, %s53
      %p60 = scmp.eq.s32.totalorder %s22, 1
      %p61 = por %p59, %p60
      %p62 = scmp.ne.s32.totalorder %s53, %s54
      %p63 = scmp.eq.s32.totalorder %s22, 0
      %p64 = por %p62, %p63
      %p65 = scmp.ne.s32.totalorder %s53, %s54
      %p66 = scmp.eq.s32.totalorder %s23, 1
      %p67 = por %p65, %p66
      %p69 = scmp.ne.s32.totalorder %s54, %s68
      %p70 = scmp.eq.s32.totalorder %s23, 0
      %p71 = por %p69, %p70
      %s73 = sadd.s32 %s72, 1
      %p76 = scmp.eq.s32.totalorder %s17, 1
      %p77 = scmp.ne.s32.totalorder %s72, %s74
      %p78 = scmp.eq.s32.totalorder %s17, 0
      %p79 = por %p77, %p78
      %p80 = scmp.ne.s32.totalorder %s72, %s74
      %p81 = scmp.eq.s32.totalorder %s22, 1
      %p82 = por %p80, %p81
      %p83 = scmp.ne.s32.totalorder %s74, %s75
      %p84 = scmp.eq.s32.totalorder %s22, 0
      %p85 = por %p83, %p84
      %p86 = scmp.ne.s32.totalorder %s74, %s75
      %p87 = scmp.eq.s32.totalorder %s23, 1
      %p88 = por %p86, %p87
      %p90 = scmp.ne.s32.totalorder %s75, %s89
      %p91 = scmp.eq.s32.totalorder %s23, 0
      %p92 = por %p90, %p91
      %s94 = sadd.s32 %s93, 1
      %p97 = scmp.eq.s32.totalorder %s17, 1
      %p98 = scmp.ne.s32.totalorder %s93, %s95
      %p99 = scmp.eq.s32.totalorder %s17, 0
      %p100 = por %p98, %p99
      %p101 = scmp.ne.s32.totalorder %s93, %s95
      %p102 = scmp.eq.s32.totalorder %s22, 1
      %p103 = por %p101, %p102
      %p104 = scmp.ne.s32.totalorder %s95, %s96
      %p105 = scmp.eq.s32.totalorder %s22, 0
      %p106 = por %p104, %p105
      %p107 = scmp.ne.s32.totalorder %s95, %s96
      %p108 = scmp.eq.s32.totalorder %s23, 1
      %p109 = por %p107, %p108
      %p111 = scmp.ne.s32.totalorder %s96, %s110
      %p112 = scmp.eq.s32.totalorder %s23, 0
      %p113 = por %p111, %p112
      %s114 = ssub.s32 %s17, %s24
      %p115 = scmp.eq.s32.totalorder %s114, 0
      %s117 = sadd.s32 %s116, 1
      %s118 = scalar_select %p115, %s116, %s117
      %p121 = pneg %p115
      %p122 = scmp.eq.s32.totalorder %s17, 1
      %p123 = por %p121, %p122
      %p124 = scmp.ne.s32.totalorder %s116, %s119
      %p125 = scmp.eq.s32.totalorder %s17, 0
      %p126 = por %p124, %p125
      %p127 = scmp.ne.s32.totalorder %s116, %s119
      %p128 = scmp.eq.s32.totalorder %s22, 1
      %p129 = por %p127, %p128
      %p130 = scmp.ne.s32.totalorder %s119, %s120
      %p131 = scmp.eq.s32.totalorder %s22, 0
      %p132 = por %p130, %p131
      %p133 = scmp.ne.s32.totalorder %s119, %s120
      %p134 = scmp.eq.s32.totalorder %s23, 1
      %p135 = por %p133, %p134
      %p137 = scmp.ne.s32.totalorder %s120, %s136
      %p138 = scmp.eq.s32.totalorder %s23, 0
      %p139 = por %p137, %p138
      %p140 = scmp.le.s32.totalorder 1, %s17
      %p141 = scmp.lt.s32.totalorder %s17, 3
      %p142 = pnand %p140, %p141
      %p143 = pneg %p142
      // Predicated region
      $region9: #{tpu_custom_call.1} parent=5 // pred_check
        _
      $region10: #{tpu_custom_call.1} parent=5 // pred_check_branch
        %145 = sbr.rel (%p142) target = $region12
      $region11: #{tpu_custom_call.1} parent=5 // pred_region
        %s146 = ssub.s32 %s17, 1
        // Predicated region
        $region13: #{tpu_custom_call.1} parent=11 // pred_check
          %p147 = pneg %p64
        $region14: #{tpu_custom_call.1} parent=11 // pred_check_branch
          %149 = sbr.rel (%p147) target = $region16
        $region15: #{tpu_custom_call.1} parent=11 // pred_region
          _
        $region16: #{tpu_custom_call.1} parent=11 // pred_fallthru
          _
        // Predicated region
        $region17: #{tpu_custom_call.1} parent=11 // pred_check
          %p150 = pneg %p85
        $region18: #{tpu_custom_call.1} parent=11 // pred_check_branch
          %152 = sbr.rel (%p150) target = $region20
        $region19: #{tpu_custom_call.1} parent=11 // pred_region
          _
        $region20: #{tpu_custom_call.1} parent=11 // pred_fallthru
          _
        // Predicated region
        $region21: #{tpu_custom_call.1} parent=11 // pred_check
          %p153 = pneg %p106
        $region22: #{tpu_custom_call.1} parent=11 // pred_check_branch
          %155 = sbr.rel (%p153) target = $region24
        $region23: #{tpu_custom_call.1} parent=11 // pred_region
          %s157 = ssub.s32 1024, 1024
          %158 = vsyncadd [#allocation6], %s157
          %s159 = sshll.u32 [#allocation5], 4
          %s160 = int_to_ptr.vmem [resolvable:$true] %s159
          %165 = dma.hbm_to_vmem [thread:$0]  %s3, 1024, %s160, [#allocation6], 256, 256, 16
        $region24: #{tpu_custom_call.1} parent=11 // pred_fallthru
          _
      $region12: #{tpu_custom_call.1} parent=5 // pred_fallthru
        _
      %p166 = scmp.lt.s32.totalorder %s17, 2
      // Predicated region
      $region25: #{tpu_custom_call.1} parent=5 // pred_check
        %p167 = pneg %p166
      $region26: #{tpu_custom_call.1} parent=5 // pred_check_branch
        %169 = sbr.rel (%p167) target = $region28
      $region27: #{tpu_custom_call.1} parent=5 // pred_region
        // Predicated region
        $region29: #{tpu_custom_call.1} parent=27 // pred_check
          %p170 = pneg %p37
        $region30: #{tpu_custom_call.1} parent=27 // pred_check_branch
          %172 = sbr.rel (%p170) target = $region32
        $region31: #{tpu_custom_call.1} parent=27 // pred_region
          %s173 = sand.u32 %s27, 1
          %s174 = scalar_lea.sflag [#allocation3], %s173
          %s175 = sand.u32 %s27, 1
          %s176 = smul.addr %s175, 8
          %s177 = scalar_lea.vmem [#allocation2], %s176
          %s179 = ssub.s32 128, 128
          %180 = vsyncadd %s174, %s179
          %s181 = smul.addr %s17, 128
          %s182 = scalar_lea.hbm %s0, %s181
          %s184 = sshll.u32 %s177, 4
          %s185 = int_to_ptr.vmem [resolvable:$true] %s184
          %187 = dma.hbm_to_vmem [thread:$0]  %s182, 128, %s185, %s174
        $region32: #{tpu_custom_call.1} parent=27 // pred_fallthru
          _
      $region28: #{tpu_custom_call.1} parent=5 // pred_fallthru
        _
      %p188 = scmp.le.s32.totalorder 1, %s17
      %p189 = scmp.lt.s32.totalorder %s17, 3
      %p190 = pnand %p188, %p189
      %p191 = pneg %p190
      // Predicated region
      $region33: #{tpu_custom_call.1} parent=5 // pred_check
        _
      $region34: #{tpu_custom_call.1} parent=5 // pred_check_branch
        %193 = sbr.rel (%p190) target = $region36
      $region35: #{tpu_custom_call.1} parent=5 // pred_region
        %s194 = ssub.s32 %s17, 1
        %s195 = sand.u32 %s30, 1
        %s196 = scalar_lea.sflag [#allocation3], %s195
        %s197 = sand.u32 %s30, 1
        %s198 = smul.addr %s197, 8
        %s199 = scalar_lea.vmem [#allocation2], %s198
        // Predicated region
        $region37: #{tpu_custom_call.1} parent=35 // pred_check
          %p200 = pneg %p43
        $region38: #{tpu_custom_call.1} parent=35 // pred_check_branch
          %202 = sbr.rel (%p200) target = $region40
        $region39: #{tpu_custom_call.1} parent=35 // pred_region
          %203 = dma.done %s196, 128
        $region40: #{tpu_custom_call.1} parent=35 // pred_fallthru
          _
        // Predicated region
        $region41: #{tpu_custom_call.1} parent=35 // pred_check
          %p204 = pneg %p106
        $region42: #{tpu_custom_call.1} parent=35 // pred_check_branch
          %206 = sbr.rel (%p204) target = $region44
        $region43: #{tpu_custom_call.1} parent=35 // pred_region
          %207 = dma.done [#allocation6], 1024
        $region44: #{tpu_custom_call.1} parent=35 // pred_fallthru
          _
        %s208 = sand.u32 %s30, 1
        %s209 = scalar_lea.sflag [#allocation3], %s208
        %s210 = sand.u32 %s30, 1
        %s211 = smul.addr %s210, 8
        %s212 = scalar_lea.vmem [#allocation2], %s211
        %p213 = pneg %p43
        %p214 = pneg %p40
        %p215 = pneg %p64
        %p216 = pneg %p61
        %p217 = pneg %p85
        %p218 = pneg %p82
        %p219 = pneg %p106
        %p220 = pneg %p103
        %p221 = pneg %p132
        %p222 = pneg %p129
        %s223 = sand.u32 %s119, 1
        %s224 = scalar_lea.sflag [#allocation4], %s223
        %s225 = sand.u32 %s119, 1
        %s226 = smul.addr %s225, 16
        %s227 = scalar_lea.vmem [#allocation7], %s226
        %v228 = vld [vmem:[%s199] sm:$0xff]
        %v229 = vld [vmem:[%s1] sm:$0x1]
        %v230 = vld [vmem:[%s2] sm:$0x1]
        %vm231 = vcmask 261120
        %v232 = vsel %vm231, %v228, 0.0
        %233 = vadd.xlane.f32.xlu0 %v232
        %v234 = vpop.xlane.xlu0 %233
        %v235 = vrcp.pop 32.0
        %v236 = vmul.f32 %v234, %v235
        %v237 = vsub.f32 %v228, %v236
        %v238 = vmul.f32 %v237, %v237
        %v239 = vsel %vm231, %v238, 0.0
        %240 = vadd.xlane.f32.xlu0 %v239
        %v241 = vpop.xlane.xlu0 %240
        %v242 = vmul.f32 %v241, %v235
        %v243 = vadd.f32 %v242, 1e-05
        %v244 = vrsqrt.pop %v243
        %v245 = vmul.f32 %v237, %v244
        %v247 = vlaneseq
        %v248 = vshrl.u32 %v247, 7
        %v249 = vsub.s32 0, %v248
        %v250 = vrot.slane %v229, %v249
        %v252 = vmul.f32 %v245, %v250
        %v254 = vlaneseq
        %v255 = vshrl.u32 %v254, 7
        %v256 = vsub.s32 0, %v255
        %v257 = vrot.slane %v230, %v256
        %v259 = vadd.f32 %v252, %v257
        %v260 = vld [vmem:[#allocation5] sm:$0xff]
        %v261 = vld [vmem:[#allocation5 + $0x8] sm:$0xff]
        %v262 = vld [vmem:[#allocation5 + $0x10] sm:$0xff]
        %v263 = vld [vmem:[#allocation5 + $0x18] sm:$0xff]
        %v264 = vld [vmem:[#allocation5 + $0x20] sm:$0xff]
        %v265 = vld [vmem:[#allocation5 + $0x28] sm:$0xff]
        %v266 = vld [vmem:[#allocation5 + $0x30] sm:$0xff]
        %v267 = vld [vmem:[#allocation5 + $0x38] sm:$0xff]
        %v269 = vsel %vm231, %v259, 0
        %271 = vmatprep.subr.mxu0 %v261
        %272 = vmatpush1.msra.mxu0 %v260
        %273 = vmatprep.subr.mxu0 %v263
        %274 = vmatpush1.msra.mxu0 %v262
        %275 = vmatprep.subr.mxu0 %v265
        %276 = vmatpush1.msra.mxu0 %v264
        %277 = vmatprep.subr.mxu0 %v267
        %278 = vmatpush1.msra.mxu0 %v266
        %279 = vmatprep.subr.mxu0 0.0
        %280 = vmatpush1.msra.mxu0 0.0
        %281 = vmatprep.subr.mxu0 0.0
        %282 = vmatpush1.msra.mxu0 0.0
        %283 = vmatprep.subr.mxu0 0.0
        %284 = vmatpush1.msra.mxu0 0.0
        %285 = vmatprep.subr.mxu0 0.0
        %286 = vmatpush1.msra.mxu0 0.0
        %287 = vmatprep.subr.mxu0 0.0
        %288 = vmatpush1.msra.mxu0 0.0
        %289 = vmatprep.subr.mxu0 0.0
        %290 = vmatpush1.msra.mxu0 0.0
        %291 = vmatprep.subr.mxu0 0.0
        %292 = vmatpush1.msra.mxu0 0.0
        %293 = vmatprep.subr.mxu0 0.0
        %294 = vmatpush1.msra.mxu0 0.0
        %295 = vmatprep.subr.mxu0 0.0
        %296 = vmatpush1.msra.mxu0 0.0
        %297 = vmatprep.subr.mxu0 0.0
        %298 = vmatpush1.msra.mxu0 0.0
        %299 = vmatprep.subr.mxu0 0.0
        %300 = vmatpush1.msra.mxu0 0.0
        %301 = vmatprep.subr.mxu0 0.0
        %302 = vmatpush1.msra.mxu0 0.0
        %303 = vmatprep.subr.mxu0 0.0
        %304 = vmatpush1.msra.mxu0 0.0
        %305 = vmatprep.subr.mxu0 0.0
        %306 = vmatpush1.msra.mxu0 0.0
        %307 = vmatprep.subr.mxu0 0.0
        %308 = vmatpush1.msra.mxu0 0.0
        %309 = vmatprep.subr.mxu0 0.0
        %310 = vmatpush1.msra.mxu0 0.0
        %311 = vmatprep.subr.mxu0 0.0
        %312 = vmatpush1.msra.mxu0 0.0
        %313 = vmatprep.subr.mxu0 0.0
        %314 = vmatpush1.msra.mxu0 0.0
        %315 = vmatprep.subr.mxu0 0.0
        %316 = vmatpush1.msra.mxu0 0.0
        %317 = vmatprep.subr.mxu0 0.0
        %318 = vmatpush1.msra.mxu0 0.0
        %319 = vmatprep.subr.mxu0 0.0
        %320 = vmatpush1.msra.mxu0 0.0
        %321 = vmatprep.subr.mxu0 0.0
        %322 = vmatpush1.msra.mxu0 0.0
        %323 = vmatprep.subr.mxu0 0.0
        %324 = vmatpush1.msra.mxu0 0.0
        %325 = vmatprep.subr.mxu0 0.0
        %326 = vmatpush1.msra.mxu0 0.0
        %327 = vmatprep.subr.mxu0 0.0
        %328 = vmatpush1.msra.mxu0 0.0
        %329 = vmatprep.subr.mxu0 0.0
        %330 = vmatpush1.msra.mxu0 0.0
        %331 = vmatprep.subr.mxu0 0.0
        %332 = vmatpush1.msra.mxu0 0.0
        %333 = vmatprep.subr.mxu0 0.0
        %334 = vmatpush1.msra.mxu0 0.0
        %335 = vmatprep.mubr.f32.mxu0 0.0
        %336 = vmatmul.mubr.f32.gmra.mrb[0].mxu0 %v269
        %v337 = vpop.f32.mrb[0].mxu0
        %v338 = vadd.f32 0.0, %v337
        %v339 = vpop.f32.mrb[0].mxu0
        %v340 = vadd.f32 0.0, %v339
        %341 = vdwg.mxu0
        %342 = vst [vmem:[%s227] sm:$0xff] %v338
        %vm343 = vcmask 523264
        %344 = vst.msk [vmem:[%s227 + $0x8] sm:$0xff] %vm343, %v340
        %s345 = sand.u32 %s119, 1
        %s346 = scalar_lea.sflag [#allocation4], %s345
        %s347 = sand.u32 %s119, 1
        %s348 = smul.addr %s347, 16
        %s349 = scalar_lea.vmem [#allocation7], %s348
        // Predicated region
        $region45: #{tpu_custom_call.1} parent=35 // pred_check
          %p350 = pneg %p129
        $region46: #{tpu_custom_call.1} parent=35 // pred_check_branch
          %352 = sbr.rel (%p350) target = $region48
        $region47: #{tpu_custom_call.1} parent=35 // pred_region
          %s354 = ssub.s32 256, 256
          %355 = vsyncadd %s346, %s354
          %s356 = smul.addr %s22, 2
          %s357 = smul.addr %s356, 128
          %s358 = scalar_lea.hbm %s4, %s357
          %s360 = sshll.u32 %s349, 4
          %s361 = int_to_ptr.vmem [resolvable:$true] %s360
          %363 = dma.vmem_to_hbm [thread:$0]  %s361, 256, %s358, %s346
        $region48: #{tpu_custom_call.1} parent=35 // pred_fallthru
          _
      $region36: #{tpu_custom_call.1} parent=5 // pred_fallthru
        _
      %p364 = scmp.le.s32.totalorder 2, %s17
      // Predicated region
      $region49: #{tpu_custom_call.1} parent=5 // pred_check
        %p365 = pneg %p364
      $region50: #{tpu_custom_call.1} parent=5 // pred_check_branch
        %367 = sbr.rel (%p365) target = $region52
      $region51: #{tpu_custom_call.1} parent=5 // pred_region
        %s368 = ssub.s32 %s17, 2
        // Predicated region
        $region53: #{tpu_custom_call.1} parent=51 // pred_check
          %p369 = pneg %p135
        $region54: #{tpu_custom_call.1} parent=51 // pred_check_branch
          %371 = sbr.rel (%p369) target = $region56
        $region55: #{tpu_custom_call.1} parent=51 // pred_region
          %s372 = sand.u32 %s120, 1
          %s373 = scalar_lea.sflag [#allocation4], %s372
          %s374 = sand.u32 %s120, 1
          %s375 = smul.addr %s374, 16
          %s376 = scalar_lea.vmem [#allocation7], %s375
          %377 = dma.done %s373, 256
        $region56: #{tpu_custom_call.1} parent=51 // pred_fallthru
          _
      $region52: #{tpu_custom_call.1} parent=5 // pred_fallthru
        _
    $region6: #{tpu_custom_call.1} parent=1 // loop_footer
      %s21 = sadd.s32 1, %s17
    $region7: #{tpu_custom_call.1} parent=1 // loop_footer_branch
      %16 = sbr.rel target = $region3
    $region8: #{tpu_custom_call.1} parent=1 // loop_exit
      _
    %378 = vsyncpa [#allocation3], 1
    %s379 = scalar_lea.sflag [#allocation3], 1
    %380 = vsyncpa %s379, 1
    %381 = vsyncpa [#allocation6], 1
    %382 = vsyncpa [#allocation4], 1
    %s383 = scalar_lea.sflag [#allocation4], 1
    %384 = vsyncpa %s383, 1

</llo_original>
